<compile_context>
chip_gen: v5e
topology: v5e:2x2
jax: 0.10.0
libtpu: 0.0.40
codegen_flags: <defaults>
</compile_context>

<pallas_src>
import jax
import jax.numpy as jnp
from jax.experimental import pallas as pl
from jax.experimental.pallas import tpu as pltpu

OUT_FEATURES = 16
LANE_TILE = 8192          # 16 * 8192 * 4 B = 512 KiB of output per grid step
SMALL_N_THRESHOLD = 4096  # below this, plain fused jnp wins (launch overhead)


def _round_up(n, m):
    return pl.cdiv(n, m) * m


def _choose_tile(n, need_two_steps):
    """Lane-tile: multiple of 128, <= LANE_TILE, optionally >= 2 grid steps."""
    t = min(LANE_TILE, _round_up(n, 128))
    if need_two_steps and t >= n and n > 256:
        # v7x has 2 TensorCores; make sure the (parallel) grid has >= 2 steps.
        t = _round_up(pl.cdiv(n, 2), 128)
    return t


def _kernel_3d(x_ref, w_ref, b_ref, o_ref):
    # x_ref: (1, 1, TS)  -- x[b, s, 0] along lanes
    # w_ref: (O, 1), b_ref: (O, 1)
    # o_ref: (1, O, TS)  -- out[b, o, s] = x[b, s] * w[o] + b[o]
    xv = x_ref[0]                                  # (1, TS)
    o_ref[0] = xv * w_ref[...] + b_ref[...]        # (O, TS), lane-dense store


def _kernel_2d(x_ref, w_ref, b_ref, o_ref):
    # x_ref: (1, TN) flattened (b*S + s) positions along lanes
    # o_ref: (O, TN): out[o, n] = x[n] * w[o] + b[o]
    o_ref[...] = x_ref[...] * w_ref[...] + b_ref[...]


def _linear_permute_3d(x, w_col, b_col):
    """Direct (B, O, S) layout output; used when S >= 128."""
    B, S, _ = x.shape
    O = w_col.shape[0]
    TS = _choose_tile(S, need_two_steps=(B == 1))
    grid = (B, pl.cdiv(S, TS))
    x3 = x.reshape(B, 1, S)  # pure relabel of the trailing size-1 dim

    return pl.pallas_call(
        _kernel_3d,
        out_shape=jax.ShapeDtypeStruct((B, O, S), x.dtype),
        grid=grid,
        in_specs=[
            pl.BlockSpec((1, 1, TS), lambda b, s: (b, 0, s)),  # x tile
            pl.BlockSpec((O, 1), lambda b, s: (0, 0)),         # weight (grid-invariant)
            pl.BlockSpec((O, 1), lambda b, s: (0, 0)),         # bias   (grid-invariant)
        ],
        out_specs=pl.BlockSpec((1, O, TS), lambda b, s: (b, 0, s)),
        compiler_params=pltpu.CompilerParams(
            dimension_semantics=("parallel", "parallel")),
    )(x3, w_col, b_col)


def _linear_permute_2d(x, w_col, b_col):
    """Lane-dense (O, N) fallback for small S (but large B*S); cheap transpose after."""
    B, S, _ = x.shape
    O = w_col.shape[0]
    N = B * S
    TN = _choose_tile(N, need_two_steps=True)
    grid = (pl.cdiv(N, TN),)
    x_flat = x.reshape(1, N)  # pure relabel

    out2d = pl.pallas_call(
        _kernel_2d,
        out_shape=jax.ShapeDtypeStruct((O, N), x.dtype),
        grid=grid,
        in_specs=[
            pl.BlockSpec((1, TN), lambda i: (0, i)),
            pl.BlockSpec((O, 1), lambda i: (0, 0)),
            pl.BlockSpec((O, 1), lambda i: (0, 0)),
        ],
        out_specs=pl.BlockSpec((O, TN), lambda i: (0, i)),
        compiler_params=pltpu.CompilerParams(dimension_semantics=("parallel",)),
    )(x_flat, w_col, b_col)

    # Only taken when S < 128 (otherwise the 3-D path writes final layout).
    return out2d.reshape(O, B, S).transpose(1, 0, 2)


def linear_permute(x, w, b):
    """x: (B, S, 1) f32; w: (16, 1); b: (16,). Returns linear(x).permute(0, 2, 1) = (B, 16, S)."""
    B, S, in_f = x.shape
    assert in_f == 1
    O = w.shape[0]
    N = B * S
    w_col = w.reshape(O, 1).astype(x.dtype)
    b_col = b.reshape(O, 1).astype(x.dtype)

    # Tiny problems: one fused XLA elementwise op, no kernel launch overhead.
    if N < SMALL_N_THRESHOLD:
        return x.reshape(B, 1, S) * w_col[None] + b_col[None]   # (B, O, S)

    if S >= 128:
        return _linear_permute_3d(x, w_col, b_col)
    return _linear_permute_2d(x, w_col, b_col)


if __name__ == "__main__":
    key = jax.random.PRNGKey(0)
    kx, kw, kb = jax.random.split(key, 3)

    # nn.Linear(1, 16) params: U(-1/sqrt(fan_in), 1/sqrt(fan_in)), fan_in = 1
    w = jax.random.uniform(kw, (OUT_FEATURES, 1), jnp.float32, -1.0, 1.0)
    b = jax.random.uniform(kb, (OUT_FEATURES,), jnp.float32, -1.0, 1.0)

    def reference(x):
        v1 = jnp.einsum("bsk,ok->bso", x, w) + b[None, None, :]
        return jnp.transpose(v1, (0, 2, 1))

    # Case 1: module-implied shape (Linear(32,64) on flatten(v1) => S=2) -> jnp fast path.
    # Case 2: S >= 128 with ragged lane tile -> Pallas 3-D kernel (direct (B,O,S) layout).
    # Case 3: small S, large B*S -> Pallas 2-D lane-dense fallback.
    cases = [(2, 2), (4, 1200), (96, 64)]
    for B, S in cases:
        kx, sub = jax.random.split(kx)
        x = jax.random.normal(sub, (B, S, 1), dtype=jnp.float32)
        out = jax.block_until_ready(linear_permute(x, w, b))
        ref = reference(x)
        assert out.shape == (B, OUT_FEATURES, S), (out.shape, (B, OUT_FEATURES, S))
        assert jnp.allclose(out, ref, atol=1e-5, rtol=1e-5), f"mismatch at B={B}, S={S}"

    print("KERNEL_OK")
</pallas_src>

<mosaic_0001>
module attributes {stable_mosaic.version = 11 : i64} {
  func.func @_kernel_3d(%arg0: i32, %arg1: i32, %arg2: memref<1x1x1280xf32, #tpu.memory_space<vmem>>, %arg3: memref<16x1xf32, #tpu.memory_space<vmem>>, %arg4: memref<16x1xf32, #tpu.memory_space<vmem>>, %arg5: memref<1x16x1280xf32, #tpu.memory_space<vmem>>) attributes {dimension_semantics = [#tpu.dimension_semantics<parallel>, #tpu.dimension_semantics<parallel>], iteration_bounds = array<i64: 4, 1>, scalar_prefetch = 0 : i64, scratch_operands = 0 : i64, tpu.core_type = #tpu.core_type<tc>, window_params = [{transform_indices = @transform_0, window_bounds = array<i64: 1, 1, 1280>}, {pipeline_mode = #tpu.pipeline_mode<synchronous>, transform_indices = @transform_1, window_bounds = array<i64: 16, 1>}, {pipeline_mode = #tpu.pipeline_mode<synchronous>, transform_indices = @transform_2, window_bounds = array<i64: 16, 1>}, {transform_indices = @transform_3, window_bounds = array<i64: 1, 16, 1280>}]} {
    %c0 = arith.constant 0 : index
    %c0_0 = arith.constant 0 : index
    %c0_1 = arith.constant 0 : index
    %0 = vector.load %arg2[%c0, %c0_0, %c0_1] : memref<1x1x1280xf32, #tpu.memory_space<vmem>>, vector<1x1x1280xf32>
    %1 = vector.shape_cast %0 : vector<1x1x1280xf32> to vector<1x1280xf32>
    %c0_2 = arith.constant 0 : index
    %c0_3 = arith.constant 0 : index
    %2 = vector.load %arg3[%c0_2, %c0_3] : memref<16x1xf32, #tpu.memory_space<vmem>>, vector<16x1xf32>
    %3 = vector.broadcast %1 : vector<1x1280xf32> to vector<16x1280xf32>
    %4 = vector.broadcast %2 : vector<16x1xf32> to vector<16x1280xf32>
    %5 = arith.mulf %3, %4 : vector<16x1280xf32>
    %c0_4 = arith.constant 0 : index
    %c0_5 = arith.constant 0 : index
    %6 = vector.load %arg4[%c0_4, %c0_5] : memref<16x1xf32, #tpu.memory_space<vmem>>, vector<16x1xf32>
    %7 = vector.broadcast %6 : vector<16x1xf32> to vector<16x1280xf32>
    %8 = arith.addf %5, %7 : vector<16x1280xf32>
    %c0_6 = arith.constant 0 : index
    %c0_7 = arith.constant 0 : index
    %c0_8 = arith.constant 0 : index
    %9 = vector.load %arg5[%c0_6, %c0_7, %c0_8] : memref<1x16x1280xf32, #tpu.memory_space<vmem>>, vector<1x16x1280xf32>
    %10 = vector.shape_cast %9 : vector<1x16x1280xf32> to vector<16x1280xf32>
    %11 = vector.shape_cast %8 : vector<16x1280xf32> to vector<1x16x1280xf32>
    tpu.vector_store %arg5[%c0_6, %c0_7, %c0_8], %11 {strides = array<i32>} : memref<1x16x1280xf32, #tpu.memory_space<vmem>>, vector<1x16x1280xf32>,
    return
  }
  func.func @transform_0(%arg0: i32, %arg1: i32) -> (i32, i32, i32) {
    %c0_i32 = arith.constant 0 : i32
    %c0_i32_0 = arith.constant 0 : i32
    return %arg0, %c0_i32, %arg1 : i32, i32, i32
  }
  func.func @transform_1(%arg0: i32, %arg1: i32) -> (i32, i32) {
    %c0_i32 = arith.constant 0 : i32
    %c0_i32_0 = arith.constant 0 : i32
    %c0_i32_1 = arith.constant 0 : i32
    return %c0_i32, %c0_i32_0 : i32, i32
  }
  func.func @transform_2(%arg0: i32, %arg1: i32) -> (i32, i32) {
    %c0_i32 = arith.constant 0 : i32
    %c0_i32_0 = arith.constant 0 : i32
    %c0_i32_1 = arith.constant 0 : i32
    return %c0_i32, %c0_i32_0 : i32, i32
  }
  func.func @transform_3(%arg0: i32, %arg1: i32) -> (i32, i32, i32) {
    %c0_i32 = arith.constant 0 : i32
    %c0_i32_0 = arith.constant 0 : i32
    return %arg0, %c0_i32, %arg1 : i32, i32, i32
  }
}

</mosaic_0001>

<llo_original>
// kernel: tpu_custom_call.1
$region0: #{tpu_custom_call.1}
  #allocation0 [shape = 'u32[]', space=smem, size = 0x4, offset = 0x4, fixed_abs, tag = 'smem constant byte address 0x4 - core index']
  #allocation1 [shape = 'u32[72,128]{1,0:T(1,128)}', space=vmem, size = 0x9000, scoped, tag = 'internal scratch']
  %s0 = inlined_call_operand.hbm [shape: f32[4,1,1200], index: 0, kind: input, shape index: {}]
  %s1 = inlined_call_operand.vmem [shape: f32[16,1], index: 1, kind: input, shape index: {}]
  %s2 = inlined_call_operand.vmem [shape: f32[16,1], index: 2, kind: input, shape index: {}]
  %s3 = inlined_call_operand.hbm [shape: f32[4,16,1200], index: 3, kind: output, shape index: {}]
  %s4 = sld [smem:[#allocation0]]
  $region49: #{tpu_custom_call.1} parent=0
    _
  %s6 = ssub.s32 1, %s4
  %s7 = scalar_select 0, %s6, %s4
  $region1: #{tpu_custom_call.1} parent=0
    #allocation2 [shape = 'u8[10240]{0}', space=vmem, size = 0x2800, scoped, tag = 'input window, operand 0']
    #allocation3 [shape = 's32[2]{0}', space=sflag, size = 0x8, scoped, tag = 'scoped memory for tpu_custom_call.1']
    #allocation4 [shape = 's32[2]{0}', space=sflag, size = 0x8, scoped, tag = 'scoped memory for tpu_custom_call.1']
    #allocation5 [shape = 'u8[163840]{0}', space=vmem, size = 0x28000, scoped, tag = 'output window, operand 0']
    %8 = vsyncpa [#allocation3], 0
    %s9 = scalar_lea.sflag [#allocation3], 1
    %10 = vsyncpa %s9, 0
    %11 = vsyncpa [#allocation4], 0
    %s12 = scalar_lea.sflag [#allocation4], 1
    %13 = vsyncpa %s12, 0
    loop: start=0, step=1, limit=6
    $region2: #{tpu_custom_call.1} parent=1 // loop_pre_header
      _
    $region3: #{tpu_custom_call.1} parent=1 // loop_header
      %s15 = sphi 0, %s19
      %p16 = scmp.ge.s32.totalorder %s15, 6
      %s22 = sphi 0, %s34
      %s23 = sphi 0, %s30
      %s24 = sphi 0, %s22
      %s25 = sphi 0, %s23
      %s26 = sphi 0, %s24
      %s27 = sphi 0, %s25
      %s39 = sphi 0, %s41
      %s42 = sphi 0, %s39
      %s43 = sphi 0, %s42
      %s59 = sphi 0, %s43
      %s63 = sphi 0, %s63
      %s65 = sphi 0, %s63
      %s66 = sphi 0, %s65
      %s80 = sphi 0, %s66
      %s84 = sphi 0, %s84
      %s86 = sphi 0, %s84
      %s87 = sphi 0, %s86
      %s101 = sphi 0, %s87
      %s109 = sphi 0, %s111
      %s112 = sphi 0, %s109
      %s113 = sphi 0, %s112
      %s129 = sphi 0, %s113
    $region4: #{tpu_custom_call.1} parent=1 // loop_header_branch
      %18 = sbr.rel (%p16) target = $region8
    $region5: #{tpu_custom_call.1} parent=1 // loop_body
      %s20 = ssub.s32 %s15, 1
      %s21 = ssub.s32 %s15, 2
      %s28 = sadd.s32 1, %s23
      %p29 = scmp.ge.s32.totalorder %s28, 1
      %s30 = scalar_select %p29, 0, %s28
      %s31 = sadd.s32 1, %s22
      %s32 = scalar_select %p29, %s31, %s22
      %p33 = scmp.ge.s32.totalorder %s32, 4
      %s34 = scalar_select %p33, 0, %s32
      %s35 = ssub.s32 %s22, %s34
      %s36 = ssub.s32 %s23, %s30
      %s37 = sor.u32 %s35, %s36
      %p38 = scmp.eq.s32.totalorder %s37, 0
      %s40 = sadd.s32 %s39, 1
      %s41 = scalar_select %p38, %s39, %s40
      %p44 = pneg %p38
      %p45 = scmp.eq.s32.totalorder %s15, 3
      %p46 = por %p44, %p45
      %p47 = scmp.ne.s32.totalorder %s39, %s42
      %p48 = scmp.eq.s32.totalorder %s15, 0
      %p49 = por %p47, %p48
      %p50 = scmp.ne.s32.totalorder %s39, %s42
      %p51 = scmp.eq.s32.totalorder %s20, 3
      %p52 = por %p50, %p51
      %p53 = scmp.ne.s32.totalorder %s42, %s43
      %p54 = scmp.eq.s32.totalorder %s20, 0
      %p55 = por %p53, %p54
      %p56 = scmp.ne.s32.totalorder %s42, %s43
      %p57 = scmp.eq.s32.totalorder %s21, 3
      %p58 = por %p56, %p57
      %p60 = scmp.ne.s32.totalorder %s43, %s59
      %p61 = scmp.eq.s32.totalorder %s21, 0
      %p62 = por %p60, %p61
      %s64 = sadd.s32 %s63, 1
      %p67 = scmp.eq.s32.totalorder %s15, 3
      %p68 = scmp.ne.s32.totalorder %s63, %s65
      %p69 = scmp.eq.s32.totalorder %s15, 0
      %p70 = por %p68, %p69
      %p71 = scmp.ne.s32.totalorder %s63, %s65
      %p72 = scmp.eq.s32.totalorder %s20, 3
      %p73 = por %p71, %p72
      %p74 = scmp.ne.s32.totalorder %s65, %s66
      %p75 = scmp.eq.s32.totalorder %s20, 0
      %p76 = por %p74, %p75
      %p77 = scmp.ne.s32.totalorder %s65, %s66
      %p78 = scmp.eq.s32.totalorder %s21, 3
      %p79 = por %p77, %p78
      %p81 = scmp.ne.s32.totalorder %s66, %s80
      %p82 = scmp.eq.s32.totalorder %s21, 0
      %p83 = por %p81, %p82
      %s85 = sadd.s32 %s84, 1
      %p88 = scmp.eq.s32.totalorder %s15, 3
      %p89 = scmp.ne.s32.totalorder %s84, %s86
      %p90 = scmp.eq.s32.totalorder %s15, 0
      %p91 = por %p89, %p90
      %p92 = scmp.ne.s32.totalorder %s84, %s86
      %p93 = scmp.eq.s32.totalorder %s20, 3
      %p94 = por %p92, %p93
      %p95 = scmp.ne.s32.totalorder %s86, %s87
      %p96 = scmp.eq.s32.totalorder %s20, 0
      %p97 = por %p95, %p96
      %p98 = scmp.ne.s32.totalorder %s86, %s87
      %p99 = scmp.eq.s32.totalorder %s21, 3
      %p100 = por %p98, %p99
      %p102 = scmp.ne.s32.totalorder %s87, %s101
      %p103 = scmp.eq.s32.totalorder %s21, 0
      %p104 = por %p102, %p103
      %s105 = ssub.s32 %s22, %s34
      %s106 = ssub.s32 %s23, %s30
      %s107 = sor.u32 %s105, %s106
      %p108 = scmp.eq.s32.totalorder %s107, 0
      %s110 = sadd.s32 %s109, 1
      %s111 = scalar_select %p108, %s109, %s110
      %p114 = pneg %p108
      %p115 = scmp.eq.s32.totalorder %s15, 3
      %p116 = por %p114, %p115
      %p117 = scmp.ne.s32.totalorder %s109, %s112
      %p118 = scmp.eq.s32.totalorder %s15, 0
      %p119 = por %p117, %p118
      %p120 = scmp.ne.s32.totalorder %s109, %s112
      %p121 = scmp.eq.s32.totalorder %s20, 3
      %p122 = por %p120, %p121
      %p123 = scmp.ne.s32.totalorder %s112, %s113
      %p124 = scmp.eq.s32.totalorder %s20, 0
      %p125 = por %p123, %p124
      %p126 = scmp.ne.s32.totalorder %s112, %s113
      %p127 = scmp.eq.s32.totalorder %s21, 3
      %p128 = por %p126, %p127
      %p130 = scmp.ne.s32.totalorder %s113, %s129
      %p131 = scmp.eq.s32.totalorder %s21, 0
      %p132 = por %p130, %p131
      %p133 = scmp.le.s32.totalorder 1, %s15
      %p134 = scmp.lt.s32.totalorder %s15, 5
      %p135 = pnand %p133, %p134
      %p136 = pneg %p135
      // Predicated region
      $region9: #{tpu_custom_call.1} parent=5 // pred_check
        _
      $region10: #{tpu_custom_call.1} parent=5 // pred_check_branch
        %138 = sbr.rel (%p135) target = $region12
      $region11: #{tpu_custom_call.1} parent=5 // pred_region
        %s139 = ssub.s32 %s15, 1
        // Predicated region
        $region13: #{tpu_custom_call.1} parent=11 // pred_check
          %p140 = pneg %p76
        $region14: #{tpu_custom_call.1} parent=11 // pred_check_branch
          %142 = sbr.rel (%p140) target = $region16
        $region15: #{tpu_custom_call.1} parent=11 // pred_region
          _
        $region16: #{tpu_custom_call.1} parent=11 // pred_fallthru
          _
        // Predicated region
        $region17: #{tpu_custom_call.1} parent=11 // pred_check
          %p143 = pneg %p97
        $region18: #{tpu_custom_call.1} parent=11 // pred_check_branch
          %145 = sbr.rel (%p143) target = $region20
        $region19: #{tpu_custom_call.1} parent=11 // pred_region
          _
        $region20: #{tpu_custom_call.1} parent=11 // pred_fallthru
          _
      $region12: #{tpu_custom_call.1} parent=5 // pred_fallthru
        _
      %p146 = scmp.lt.s32.totalorder %s15, 4
      // Predicated region
      $region21: #{tpu_custom_call.1} parent=5 // pred_check
        %p147 = pneg %p146
      $region22: #{tpu_custom_call.1} parent=5 // pred_check_branch
        %149 = sbr.rel (%p147) target = $region24
      $region23: #{tpu_custom_call.1} parent=5 // pred_region
        // Predicated region
        $region25: #{tpu_custom_call.1} parent=23 // pred_check
          %p150 = pneg %p49
        $region26: #{tpu_custom_call.1} parent=23 // pred_check_branch
          %152 = sbr.rel (%p150) target = $region28
        $region27: #{tpu_custom_call.1} parent=23 // pred_region
          %s153 = sand.u32 %s39, 1
          %s154 = scalar_lea.sflag [#allocation3], %s153
          %s155 = sand.u32 %s39, 1
          %s156 = smul.addr %s155, 10
          %s157 = scalar_lea.vmem [#allocation2], %s156
          %s158 = smul.u32 10, %s23
          %160 = vsyncadd %s154, 0
          %s161 = smul.addr %s22, 10
          %s162 = sadd.s32 %s158, %s161
          %s163 = scalar_lea.hbm %s0, %s162
          %s165 = sshll.u32 %s163, 4
          %s166 = int_to_ptr.hbm [resolvable:$true] %s165
          %s167 = sshll.u32 %s157, 4
          %s168 = int_to_ptr.vmem [resolvable:$true] %s167
          %170 = dma.hbm_to_vmem [thread:$0]  %s166, 160, %s168, %s154
        $region28: #{tpu_custom_call.1} parent=23 // pred_fallthru
          _
      $region24: #{tpu_custom_call.1} parent=5 // pred_fallthru
        _
      %p171 = scmp.le.s32.totalorder 1, %s15
      %p172 = scmp.lt.s32.totalorder %s15, 5
      %p173 = pnand %p171, %p172
      %p174 = pneg %p173
      // Predicated region
      $region29: #{tpu_custom_call.1} parent=5 // pred_check
        _
      $region30: #{tpu_custom_call.1} parent=5 // pred_check_branch
        %176 = sbr.rel (%p173) target = $region32
      $region31: #{tpu_custom_call.1} parent=5 // pred_region
        %s177 = ssub.s32 %s15, 1
        %s178 = sand.u32 %s42, 1
        %s179 = scalar_lea.sflag [#allocation3], %s178
        %s180 = sand.u32 %s42, 1
        %s181 = smul.addr %s180, 10
        %s182 = scalar_lea.vmem [#allocation2], %s181
        // Predicated region
        $region33: #{tpu_custom_call.1} parent=31 // pred_check
          %p183 = pneg %p55
        $region34: #{tpu_custom_call.1} parent=31 // pred_check_branch
          %185 = sbr.rel (%p183) target = $region36
        $region35: #{tpu_custom_call.1} parent=31 // pred_region
          %187 = dma.done %s179, 160
        $region36: #{tpu_custom_call.1} parent=31 // pred_fallthru
          _
        %s188 = sand.u32 %s42, 1
        %s189 = scalar_lea.sflag [#allocation3], %s188
        %s190 = sand.u32 %s42, 1
        %s191 = smul.addr %s190, 10
        %s192 = scalar_lea.vmem [#allocation2], %s191
        %p193 = pneg %p55
        %p194 = pneg %p52
        %p195 = pneg %p76
        %p196 = pneg %p73
        %p197 = pneg %p97
        %p198 = pneg %p94
        %p199 = pneg %p125
        %p200 = pneg %p122
        %s201 = sand.u32 %s112, 1
        %s202 = scalar_lea.sflag [#allocation4], %s201
        %s203 = sand.u32 %s112, 1
        %s204 = smul.addr %s203, 160
        %s205 = scalar_lea.vmem [#allocation5], %s204
        %s206 = smul.u32 10, %s25
        %s207 = smul.u32 10, %s25
        %v208 = vld [vmem:[%s182] sm:$0xff]
        %v209 = vld [vmem:[%s182 + $0x8] sm:$0x3]
        %v210 = vld [vmem:[%s1] sm:$0xff]
        %v211 = vld [vmem:[%s1 + $0x8] sm:$0xff]
        %v214 = vperm.slane %v208, 0
        %v215 = vperm.slane %v208, 1
        %v216 = vperm.slane %v208, 2
        %v217 = vperm.slane %v208, 3
        %v218 = vperm.slane %v208, 4
        %v219 = vperm.slane %v208, 5
        %v220 = vperm.slane %v208, 6
        %v221 = vperm.slane %v208, 7
        %v222 = vperm.slane %v209, 0
        %v223 = vperm.slane %v209, 1
        %235 = vset.pattern.permute.xlu0 0
        %236 = vperm.xlu0 %235, %v210
        %v237 = vpop.permute.xlu0 %236
        %240 = vset.pattern.permute.xlu0 0
        %241 = vperm.xlu0 %240, %v211
        %v242 = vpop.permute.xlu0 %241
        %v244 = vmul.f32 %v214, %v237
        %v245 = vmul.f32 %v215, %v237
        %v246 = vmul.f32 %v216, %v237
        %v247 = vmul.f32 %v217, %v237
        %v248 = vmul.f32 %v218, %v237
        %v249 = vmul.f32 %v219, %v237
        %v250 = vmul.f32 %v220, %v237
        %v251 = vmul.f32 %v221, %v237
        %v252 = vmul.f32 %v222, %v237
        %v253 = vmul.f32 %v223, %v237
        %v254 = vmul.f32 %v214, %v242
        %v255 = vmul.f32 %v215, %v242
        %v256 = vmul.f32 %v216, %v242
        %v257 = vmul.f32 %v217, %v242
        %v258 = vmul.f32 %v218, %v242
        %v259 = vmul.f32 %v219, %v242
        %v260 = vmul.f32 %v220, %v242
        %v261 = vmul.f32 %v221, %v242
        %v262 = vmul.f32 %v222, %v242
        %v263 = vmul.f32 %v223, %v242
        %v264 = vld [vmem:[%s2] sm:$0xff]
        %v265 = vld [vmem:[%s2 + $0x8] sm:$0xff]
        %267 = vset.pattern.permute.xlu0 0
        %268 = vperm.xlu0 %267, %v264
        %v269 = vpop.permute.xlu0 %268
        %272 = vset.pattern.permute.xlu0 0
        %273 = vperm.xlu0 %272, %v265
        %v274 = vpop.permute.xlu0 %273
        %v276 = vadd.f32 %v244, %v269
        %v277 = vadd.f32 %v245, %v269
        %v278 = vadd.f32 %v246, %v269
        %v279 = vadd.f32 %v247, %v269
        %v280 = vadd.f32 %v248, %v269
        %v281 = vadd.f32 %v249, %v269
        %v282 = vadd.f32 %v250, %v269
        %v283 = vadd.f32 %v251, %v269
        %v284 = vadd.f32 %v252, %v269
        %v285 = vadd.f32 %v253, %v269
        %v286 = vadd.f32 %v254, %v274
        %v287 = vadd.f32 %v255, %v274
        %v288 = vadd.f32 %v256, %v274
        %v289 = vadd.f32 %v257, %v274
        %v290 = vadd.f32 %v258, %v274
        %v291 = vadd.f32 %v259, %v274
        %v292 = vadd.f32 %v260, %v274
        %v293 = vadd.f32 %v261, %v274
        %v294 = vadd.f32 %v262, %v274
        %v295 = vadd.f32 %v263, %v274
        %296 = vst [vmem:[%s205] sm:$0xff] %v276
        %297 = vst [vmem:[%s205 + $0x8] sm:$0xff] %v277
        %298 = vst [vmem:[%s205 + $0x10] sm:$0xff] %v278
        %299 = vst [vmem:[%s205 + $0x18] sm:$0xff] %v279
        %300 = vst [vmem:[%s205 + $0x20] sm:$0xff] %v280
        %301 = vst [vmem:[%s205 + $0x28] sm:$0xff] %v281
        %302 = vst [vmem:[%s205 + $0x30] sm:$0xff] %v282
        %303 = vst [vmem:[%s205 + $0x38] sm:$0xff] %v283
        %304 = vst [vmem:[%s205 + $0x40] sm:$0xff] %v284
        %305 = vst [vmem:[%s205 + $0x48] sm:$0xff] %v285
        %306 = vst [vmem:[%s205 + $0x50] sm:$0xff] %v286
        %307 = vst [vmem:[%s205 + $0x58] sm:$0xff] %v287
        %308 = vst [vmem:[%s205 + $0x60] sm:$0xff] %v288
        %309 = vst [vmem:[%s205 + $0x68] sm:$0xff] %v289
        %310 = vst [vmem:[%s205 + $0x70] sm:$0xff] %v290
        %311 = vst [vmem:[%s205 + $0x78] sm:$0xff] %v291
        %312 = vst [vmem:[%s205 + $0x80] sm:$0xff] %v292
        %313 = vst [vmem:[%s205 + $0x88] sm:$0xff] %v293
        %314 = vst [vmem:[%s205 + $0x90] sm:$0xff] %v294
        %315 = vst [vmem:[%s205 + $0x98] sm:$0xff] %v295
        %s316 = sand.u32 %s112, 1
        %s317 = scalar_lea.sflag [#allocation4], %s316
        %s318 = sand.u32 %s112, 1
        %s319 = smul.addr %s318, 160
        %s320 = scalar_lea.vmem [#allocation5], %s319
        // Predicated region
        $region37: #{tpu_custom_call.1} parent=31 // pred_check
          %p321 = pneg %p122
        $region38: #{tpu_custom_call.1} parent=31 // pred_check_branch
          %323 = sbr.rel (%p321) target = $region40
        $region39: #{tpu_custom_call.1} parent=31 // pred_region
          %s324 = smul.u32 10, %s25
          %326 = vsyncadd %s317, 0
          %s327 = smul.addr %s24, 20
          %s328 = sadd.s32 %s324, %s327
          %s329 = smul.addr %s328, 8
          %s330 = scalar_lea.hbm %s3, %s329
          %s331 = sshll.u32 %s320, 4
          %s332 = int_to_ptr.vmem [resolvable:$true] %s331
          %s333 = sshll.u32 %s330, 4
          %s334 = int_to_ptr.hbm [resolvable:$true] %s333
          %339 = dma.vmem_to_hbm [thread:$0]  %s332, 2560, %s334, %s317, 1280, 1280, 80
        $region40: #{tpu_custom_call.1} parent=31 // pred_fallthru
          _
      $region32: #{tpu_custom_call.1} parent=5 // pred_fallthru
        _
      %p340 = scmp.le.s32.totalorder 2, %s15
      // Predicated region
      $region41: #{tpu_custom_call.1} parent=5 // pred_check
        %p341 = pneg %p340
      $region42: #{tpu_custom_call.1} parent=5 // pred_check_branch
        %343 = sbr.rel (%p341) target = $region44
      $region43: #{tpu_custom_call.1} parent=5 // pred_region
        %s344 = ssub.s32 %s15, 2
        // Predicated region
        $region45: #{tpu_custom_call.1} parent=43 // pred_check
          %p345 = pneg %p128
        $region46: #{tpu_custom_call.1} parent=43 // pred_check_branch
          %347 = sbr.rel (%p345) target = $region48
        $region47: #{tpu_custom_call.1} parent=43 // pred_region
          %s348 = sand.u32 %s113, 1
          %s349 = scalar_lea.sflag [#allocation4], %s348
          %s350 = sand.u32 %s113, 1
          %s351 = smul.addr %s350, 160
          %s352 = scalar_lea.vmem [#allocation5], %s351
          %354 = dma.done %s349, 2560
        $region48: #{tpu_custom_call.1} parent=43 // pred_fallthru
          _
      $region44: #{tpu_custom_call.1} parent=5 // pred_fallthru
        _
    $region6: #{tpu_custom_call.1} parent=1 // loop_footer
      %s19 = sadd.s32 1, %s15
    $region7: #{tpu_custom_call.1} parent=1 // loop_footer_branch
      %14 = sbr.rel target = $region3
    $region8: #{tpu_custom_call.1} parent=1 // loop_exit
      _
    %355 = vsyncpa [#allocation3], 1
    %s356 = scalar_lea.sflag [#allocation3], 1
    %357 = vsyncpa %s356, 1
    %358 = vsyncpa [#allocation4], 1
    %s359 = scalar_lea.sflag [#allocation4], 1
    %360 = vsyncpa %s359, 1

</llo_original>
